<compile_context>
chip_gen: v6e
topology: v6e:2x2x1
jax: 0.10.0
libtpu: 0.0.40
codegen_flags: <defaults>
</compile_context>

<pallas_src>
import functools

import jax
import jax.numpy as jnp
from jax import lax
from jax.experimental import pallas as pl
from jax.experimental.pallas import tpu as pltpu

_LANE = 128


def _cdiv(a, b):
    return -(-a // b)


def _round_up(n, m):
    return _cdiv(n, m) * m


def _sublane(dtype):
    return {4: 8, 2: 16, 1: 32}.get(jnp.dtype(dtype).itemsize, 8)


def _gap_kernel(x_ref, o_ref, acc_ref, *, inv_hw, tail_cols):
    """Streaming global-average-pool row reduction.

    x_ref:   (tile_rows, tile_cols) input block, reduction axis on lanes.
    o_ref:   (tile_rows, 1) output block, resident across the k (column) axis.
    acc_ref: (tile_rows, 128) f32 lane-parallel partial-sum scratch.
    tail_cols: static number of valid columns in the LAST k block.
    """
    k = pl.program_id(1)
    n_k = pl.num_programs(1)
    tile_rows, tile_cols = x_ref.shape

    @pl.when(k == 0)
    def _():
        acc_ref[...] = jnp.zeros_like(acc_ref)

    def accumulate(valid_cols):
        # Lane-parallel partial sums: pure VPU adds over 128-lane slices;
        # the cross-lane (XLU) reduce is deferred to the final step.
        x = x_ref[...]
        s = None
        for lo in range(0, valid_cols, _LANE):
            sl = x[:, lo:lo + _LANE].astype(jnp.float32)
            width = min(_LANE, valid_cols - lo)
            if width < _LANE:
                lane = lax.broadcasted_iota(jnp.int32, sl.shape, 1)
                sl = jnp.where(lane < width, sl, 0.0)
            s = sl if s is None else s + sl
        acc_ref[...] += s

    if tail_cols == tile_cols:
        accumulate(tile_cols)
    else:
        @pl.when(k != n_k - 1)
        def _():
            accumulate(tile_cols)

        @pl.when(k == n_k - 1)
        def _():
            accumulate(tail_cols)

    @pl.when(k == n_k - 1)
    def _():
        total = jnp.sum(acc_ref[...], axis=-1, keepdims=True)  # single XLU reduce
        o_ref[...] = (total * inv_hw).astype(o_ref.dtype)


def _choose_tiles(rows, cols, dtype):
    itemsize = jnp.dtype(dtype).itemsize
    sublane = _sublane(dtype)

    # Column tiling: lane-dense, balanced chunks capped at MAX_TILE_COLS.
    max_tile_cols = 4096
    cols128 = _round_up(cols, _LANE)
    n_col_chunks = _cdiv(cols128, max_tile_cols)
    tile_cols = _round_up(_cdiv(cols128, n_col_chunks), _LANE)

    # Row tiling: ~8 MiB per input block (x2 double buffering fits every
    # generation's scoped VMEM).  Balanced so over-read is < one sublane group,
    # and >= 2 row tiles whenever possible so dimension_semantics=("parallel",)
    # can shard across both TensorCores on v7x.
    block_budget_bytes = 8 * 1024 * 1024
    rows_cap = max(sublane,
                   (block_budget_bytes // (tile_cols * itemsize)) // sublane * sublane)
    rows_cap = min(rows_cap, 1024)
    rows8 = _round_up(rows, sublane)
    n_row_tiles = _cdiv(rows8, rows_cap)
    if rows8 >= 2 * sublane:
        n_row_tiles = max(n_row_tiles, 2)
    tile_rows = _round_up(_cdiv(rows8, n_row_tiles), sublane)
    return tile_rows, tile_cols


def _flatten_pallas(x):
    """Pallas global-average-pool: NCHW (B, C, H, W) -> (B, C)."""
    B, C, H, W = x.shape
    rows, cols = B * C, H * W
    x2 = x.reshape(rows, cols)  # contiguous view; no data movement

    tile_rows, tile_cols = _choose_tiles(rows, cols, x.dtype)
    grid = (_cdiv(rows, tile_rows), _cdiv(cols, tile_cols))
    tail_cols = cols - (grid[1] - 1) * tile_cols  # static, > 0

    kernel = functools.partial(
        _gap_kernel, inv_hw=1.0 / float(cols), tail_cols=tail_cols
    )

    out = pl.pallas_call(
        kernel,
        out_shape=jax.ShapeDtypeStruct((rows, 1), x.dtype),
        grid_spec=pltpu.PrefetchScalarGridSpec(
            num_scalar_prefetch=0,
            grid=grid,
            in_specs=[pl.BlockSpec((tile_rows, tile_cols), lambda i, k: (i, k))],
            out_specs=pl.BlockSpec((tile_rows, 1), lambda i, k: (i, 0)),
            scratch_shapes=[pltpu.VMEM((tile_rows, _LANE), jnp.float32)],
        ),
        compiler_params=pltpu.CompilerParams(
            dimension_semantics=("parallel", "arbitrary"),
            vmem_limit_bytes=48 * 1024 * 1024,
        ),
    )(x2)

    return out[:, 0].reshape(B, C)


def flatten_forward(x, *, force_pallas=False):
    """Equivalent of Flatten().forward(x) for NCHW input x -> (B, C)."""
    B, C, H, W = x.shape
    # Sub-~2MiB problems: pallas_call fixed overhead dominates; let XLA fuse.
    if not force_pallas and x.size * jnp.dtype(x.dtype).itemsize < (2 << 20):
        return jnp.mean(x, axis=(2, 3)).reshape(B, C)
    return _flatten_pallas(x)


if __name__ == "__main__":
    key = jax.random.PRNGKey(0)
    k0, k1, k2, k3, k4 = jax.random.split(key, 5)

    # Primary, module-consistent shape: batch=2, channels=4, spatial=16x16.
    x = jax.random.normal(k0, (2, 4, 16, 16), dtype=jnp.float32)
    out = jax.block_until_ready(_flatten_pallas(x))
    ref = jnp.mean(x, axis=(2, 3)).reshape(2, -1)
    assert out.shape == (2, 4), out.shape
    assert jnp.allclose(out, ref, atol=1e-5, rtol=1e-4), "mismatch vs reference"

    # Ragged rows (10) and columns (63): in-kernel tail masking + partial row block.
    x_odd = jax.random.normal(k1, (2, 5, 7, 9), dtype=jnp.float32)
    out_odd = jax.block_until_ready(_flatten_pallas(x_odd))
    ref_odd = jnp.mean(x_odd, axis=(2, 3)).reshape(2, -1)
    assert out_odd.shape == (2, 5), out_odd.shape
    assert jnp.allclose(out_odd, ref_odd, atol=1e-5, rtol=1e-4), "ragged mismatch"

    # H*W > max column tile (5184 -> 2 even reduction chunks): accumulator path.
    x_big = jax.random.normal(k2, (1, 8, 72, 72), dtype=jnp.float32)
    out_big = jax.block_until_ready(_flatten_pallas(x_big))
    ref_big = jnp.mean(x_big, axis=(2, 3)).reshape(1, -1)
    assert jnp.allclose(out_big, ref_big, atol=1e-5, rtol=1e-4), "chunked mismatch"

    # Multiple reduction chunks AND a ragged tail (4225 cols -> tail of 2049).
    x_rt = jax.random.normal(k3, (1, 16, 65, 65), dtype=jnp.float32)
    out_rt = jax.block_until_ready(_flatten_pallas(x_rt))
    ref_rt = jnp.mean(x_rt, axis=(2, 3)).reshape(1, -1)
    assert jnp.allclose(out_rt, ref_rt, atol=1e-5, rtol=1e-4), "chunked+ragged mismatch"

    # bf16 input: dtype-aware sublane (16) path, f32 accumulation.
    x_bf = jax.random.normal(k4, (2, 16, 16, 16), dtype=jnp.bfloat16)
    out_bf = jax.block_until_ready(_flatten_pallas(x_bf))
    ref_bf = jnp.mean(x_bf.astype(jnp.float32), axis=(2, 3)).reshape(2, -1)
    assert jnp.allclose(out_bf.astype(jnp.float32), ref_bf, atol=1e-2, rtol=1e-2), \
        "bf16 mismatch"

    # Dispatcher (falls back to XLA for tiny inputs) stays correct too.
    out_d = jax.block_until_ready(flatten_forward(x))
    assert jnp.allclose(out_d, ref, atol=1e-5, rtol=1e-4), "dispatch mismatch"

    print("KERNEL_OK")
</pallas_src>

<mosaic_0001>
module attributes {stable_mosaic.version = 11 : i64} {
  func.func @_gap_kernel(%arg0: i32, %arg1: i32, %arg2: memref<8x256xf32, #tpu.memory_space<vmem>>, %arg3: memref<8x1xf32, #tpu.memory_space<vmem>>, %arg4: memref<8x128xf32, #tpu.memory_space<vmem>>) attributes {dimension_semantics = [#tpu.dimension_semantics<parallel>, #tpu.dimension_semantics<arbitrary>], iteration_bounds = array<i64: 1, 1>, scalar_prefetch = 0 : i64, scratch_operands = 1 : i64, tpu.core_type = #tpu.core_type<tc>, window_params = [{transform_indices = @transform_0, window_bounds = array<i64: 8, 256>}, {transform_indices = @transform_1, window_bounds = array<i64: 8, 1>}]} {
    %c0_i32 = arith.constant 0 : i32
    %0 = arith.cmpi eq, %arg1, %c0_i32 : i32
    %1 = arith.extui %0 : i1 to i32
    %c0_i32_0 = arith.constant 0 : i32
    %2 = arith.cmpi ne, %1, %c0_i32_0 : i32
    scf.if %2 {
      %cst = arith.constant 0.000000e+00 : f32
      %13 = vector.broadcast %cst : f32 to vector<8x128xf32>
      %c0_8 = arith.constant 0 : index
      %c0_9 = arith.constant 0 : index
      %14 = vector.load %arg4[%c0_8, %c0_9] : memref<8x128xf32, #tpu.memory_space<vmem>>, vector<8x128xf32>
      tpu.vector_store %arg4[%c0_8, %c0_9], %13 {strides = array<i32>} : memref<8x128xf32, #tpu.memory_space<vmem>>, vector<8x128xf32>,
    } else {
    }
    %c0 = arith.constant 0 : index
    %c0_1 = arith.constant 0 : index
    %3 = vector.load %arg2[%c0, %c0_1] : memref<8x256xf32, #tpu.memory_space<vmem>>, vector<8x256xf32>
    %4 = vector.extract_strided_slice %3 {offsets = [0, 0], sizes = [8, 128], strides = [1, 1]} : vector<8x256xf32> to vector<8x128xf32>
    %5 = vector.extract_strided_slice %3 {offsets = [0, 128], sizes = [8, 128], strides = [1, 1]} : vector<8x256xf32> to vector<8x128xf32>
    %6 = arith.addf %4, %5 : vector<8x128xf32>
    %c0_2 = arith.constant 0 : index
    %c0_3 = arith.constant 0 : index
    %7 = vector.load %arg4[%c0_2, %c0_3] : memref<8x128xf32, #tpu.memory_space<vmem>>, vector<8x128xf32>
    %8 = arith.addf %7, %6 : vector<8x128xf32>
    %c0_4 = arith.constant 0 : index
    %c0_5 = arith.constant 0 : index
    %9 = vector.load %arg4[%c0_4, %c0_5] : memref<8x128xf32, #tpu.memory_space<vmem>>, vector<8x128xf32>
    tpu.vector_store %arg4[%c0_4, %c0_5], %8 {strides = array<i32>} : memref<8x128xf32, #tpu.memory_space<vmem>>, vector<8x128xf32>,
    %c0_i32_6 = arith.constant 0 : i32
    %10 = arith.cmpi eq, %arg1, %c0_i32_6 : i32
    %11 = arith.extui %10 : i1 to i32
    %c0_i32_7 = arith.constant 0 : i32
    %12 = arith.cmpi ne, %11, %c0_i32_7 : i32
    scf.if %12 {
      %c0_8 = arith.constant 0 : index
      %c0_9 = arith.constant 0 : index
      %13 = vector.load %arg4[%c0_8, %c0_9] : memref<8x128xf32, #tpu.memory_space<vmem>>, vector<8x128xf32>
      %cst = arith.constant dense<0.000000e+00> : vector<8xf32>
      %14 = vector.multi_reduction <add>, %13, %cst [1] : vector<8x128xf32> to vector<8xf32>
      %15 = vector.shape_cast %14 : vector<8xf32> to vector<8x1xf32>
      %cst_10 = arith.constant 3.906250e-03 : f32
      %16 = vector.broadcast %cst_10 : f32 to vector<8x1xf32>
      %17 = arith.mulf %15, %16 : vector<8x1xf32>
      %c0_11 = arith.constant 0 : index
      %c0_12 = arith.constant 0 : index
      %18 = vector.load %arg3[%c0_11, %c0_12] : memref<8x1xf32, #tpu.memory_space<vmem>>, vector<8x1xf32>
      tpu.vector_store %arg3[%c0_11, %c0_12], %17 {strides = array<i32>} : memref<8x1xf32, #tpu.memory_space<vmem>>, vector<8x1xf32>,
    } else {
    }
    return
  }
  func.func @transform_0(%arg0: i32, %arg1: i32) -> (i32, i32) {
    %c0_i32 = arith.constant 0 : i32
    return %arg0, %arg1 : i32, i32
  }
  func.func @transform_1(%arg0: i32, %arg1: i32) -> (i32, i32) {
    %c0_i32 = arith.constant 0 : i32
    %c0_i32_0 = arith.constant 0 : i32
    return %arg0, %c0_i32 : i32, i32
  }
}

</mosaic_0001>

<llo_original>
// kernel: tpu_custom_call.1
$region0: #{tpu_custom_call.1}
  #allocation0 [shape = 'u32[]', space=smem, size = 0x4, offset = 0x4, fixed_abs, tag = 'smem constant byte address 0x4 - core index']
  #allocation1 [shape = 'u32[144,128]{1,0:T(1,128)}', space=vmem, size = 0x12000, scoped, tag = 'internal scratch']
  #allocation2 [shape = 'f32[8,128]{1,0:T(8,128)}', space=vmem, size = 0x1000, scoped, tag = 'scratch operand']
  %s0 = inlined_call_operand.hbm [shape: f32[8,256], index: 0, kind: input, shape index: {}]
  %s1 = inlined_call_operand.vmem [shape: f32[8,1], index: 1, kind: output, shape index: {}]
  %s2 = sld [smem:[#allocation0]]
  $region26: #{tpu_custom_call.1} parent=0
    _
  %s4 = ssub.s32 1, %s2
  %s5 = scalar_select 0, %s4, %s2
  $region1: #{tpu_custom_call.1} parent=0
    #allocation3 [shape = 'u8[8192]{0}', space=vmem, size = 0x2000, scoped, tag = 'input window, operand 0, single buffered']
    #allocation4 [shape = 's32[1]{0}', space=sflag, size = 0x4, scoped, tag = 'scoped memory for tpu_custom_call.1']
    %6 = vsyncpa [#allocation4], 0
    // Predicated region
    $region2: #{tpu_custom_call.1} parent=1 // pred_check
      _
    $region3: #{tpu_custom_call.1} parent=1 // pred_check_branch
      %8 = sbr.rel (0) target = $region5
    $region4: #{tpu_custom_call.1} parent=1 // pred_region
      %s10 = ssub.s32 256, 256
      %11 = vsyncadd [#allocation4], %s10
      %s13 = sshll.u32 [#allocation3], 4
      %s14 = int_to_ptr.vmem [resolvable:$true] %s13
      %16 = dma.hbm_to_vmem [thread:$0]  %s0, 256, %s14, [#allocation4]
    $region5: #{tpu_custom_call.1} parent=1 // pred_fallthru
      _
    // Predicated region
    $region6: #{tpu_custom_call.1} parent=1 // pred_check
      _
    $region7: #{tpu_custom_call.1} parent=1 // pred_check_branch
      %18 = sbr.rel (0) target = $region9
    $region8: #{tpu_custom_call.1} parent=1 // pred_region
      %19 = dma.done [#allocation4], 256
    $region9: #{tpu_custom_call.1} parent=1 // pred_fallthru
      _
    %p20 = scmp.eq.s32.totalorder 0, 0
    // Predicated region
    $region10: #{tpu_custom_call.1} parent=1 // pred_check
      %p21 = pneg %p20
    $region11: #{tpu_custom_call.1} parent=1 // pred_check_branch
      %23 = sbr.rel (%p21) target = $region13
    $region12: #{tpu_custom_call.1} parent=1 // pred_region
      %24 = vst [vmem:[#allocation2] sm:$0xff] 0.0
    $region13: #{tpu_custom_call.1} parent=1 // pred_fallthru
      _
    %v25 = vld [vmem:[#allocation3] sm:$0xff]
    %v26 = vld [vmem:[#allocation3 + $0x8] sm:$0xff]
    %v27 = vadd.f32 %v25, %v26
    %v28 = vld [vmem:[#allocation2] sm:$0xff]
    %v29 = vadd.f32 %v28, %v27
    %30 = vst [vmem:[#allocation2] sm:$0xff] %v29
    // Predicated region
    $region14: #{tpu_custom_call.1} parent=1 // pred_check
      %p31 = pneg %p20
    $region15: #{tpu_custom_call.1} parent=1 // pred_check_branch
      %33 = sbr.rel (%p31) target = $region17
    $region16: #{tpu_custom_call.1} parent=1 // pred_region
      %v34 = vld [vmem:[#allocation2] sm:$0xff]
      %35 = vadd.xlane.f32.xlu0 %v34
      %v36 = vpop.xlane.xlu0 %35
      %v37 = vmul.f32 %v36, 0.00390625
      %vm38 = vcmask 7168
      %39 = vst.msk [vmem:[%s1] sm:$0xff] %vm38, %v37
    $region17: #{tpu_custom_call.1} parent=1 // pred_fallthru
      _
    // Predicated region
    $region18: #{tpu_custom_call.1} parent=1 // pred_check
      _
    $region19: #{tpu_custom_call.1} parent=1 // pred_check_branch
      %41 = sbr.rel (0) target = $region21
    $region20: #{tpu_custom_call.1} parent=1 // pred_region
      _
    $region21: #{tpu_custom_call.1} parent=1 // pred_fallthru
      _
    // Predicated region
    $region22: #{tpu_custom_call.1} parent=1 // pred_check
      _
    $region23: #{tpu_custom_call.1} parent=1 // pred_check_branch
      %43 = sbr.rel (0) target = $region25
    $region24: #{tpu_custom_call.1} parent=1 // pred_region
      _
    $region25: #{tpu_custom_call.1} parent=1 // pred_fallthru
      _
    %44 = vsyncpa [#allocation4], 1

</llo_original>
